<compile_context>
chip_gen: v6e
topology: v6e:2x2x1
jax: 0.10.0
libtpu: 0.0.40
codegen_flags: <defaults>
</compile_context>

<pallas_src>
import functools

import jax
import jax.numpy as jnp
from jax.experimental import pallas as pl
from jax.experimental.pallas import tpu as pltpu


# ---------------------------------------------------------------------------
# Generation-aware budgets.
# ---------------------------------------------------------------------------
def _vmem_capacity_bytes():
    default = 64 * 1024 * 1024  # conservative (v7x-sized) fallback
    try:
        info = pltpu.get_tpu_info()
        return int(getattr(info, "vmem_capacity_bytes", default))
    except Exception:
        return default


def _vmem_budget():
    cap = _vmem_capacity_bytes()
    if cap >= 96 * 1024 * 1024:
        # v5e / v6e: 128 MiB physical VMEM -> bigger tiles, higher limit.
        return 4 * 1024 * 1024, 64 * 1024 * 1024
    # v7x: 64 MiB per TensorCore -> keep per-block budget <= ~4 MiB.
    return 3 * 1024 * 1024, 48 * 1024 * 1024


def _pick_s_tile(C, S, itemsize, target_bytes):
    # Size the (C, s_tile) block by bytes only so small-C models still get
    # long, per-step-overhead-amortizing DMAs; cap generously at 32768 lanes.
    s_tile = (target_bytes // (max(C, 1) * itemsize)) // 128 * 128
    s_tile = max(128, min(s_tile, 32768))
    s_full = pl.cdiv(S, 128) * 128  # never wider than the lane-padded extent
    return min(s_tile, s_full)


# ---------------------------------------------------------------------------
# Fused single-pass kernel (small volumes): pool -> excite MLP -> rescale.
# The MLP is tiny (C x hid), so it runs on VPU/XLU with broadcast-multiply +
# axis reductions — no MXU, no transposes.
# ---------------------------------------------------------------------------
def _fused_kernel(x_ref, w1t_ref, w2_ref, o_ref, *, inv_s):
    # x_ref: (1, C, S); w1t_ref: (C, hid) = linear1.weight.T; w2_ref: (C, hid)
    x = x_ref[0]                                                # (C, S)
    xf = x.astype(jnp.float32)
    pool = jnp.sum(xf, axis=-1, keepdims=True) * inv_s          # (C, 1) f32
    h = jnp.maximum(
        jnp.sum(w1t_ref[...] * pool, axis=0, keepdims=True), 0.0
    )                                                           # (1, hid)
    scale = jax.nn.sigmoid(
        jnp.sum(w2_ref[...] * h, axis=1, keepdims=True)
    )                                                           # (C, 1)
    o_ref[0] = (xf * scale).astype(o_ref.dtype)


# ---------------------------------------------------------------------------
# Pass 1: spatially tiled global sum-pool over the unpadded array.
# Accumulates directly into the resident (1, C, 1) output block; only the
# ragged last tile is masked.
# ---------------------------------------------------------------------------
def _pool_kernel(x_ref, sum_ref, *, S, s_tile):
    s = pl.program_id(1)
    n_s = pl.num_programs(1)

    @pl.when(s == 0)
    def _():
        sum_ref[...] = jnp.zeros_like(sum_ref)

    x = x_ref[0].astype(jnp.float32)                            # (C, s_tile)

    @pl.when(s < n_s - 1)
    def _():
        sum_ref[0] += jnp.sum(x, axis=-1, keepdims=True)

    @pl.when(s == n_s - 1)
    def _():
        # Number of valid lanes in this (possibly ragged) last tile.
        rem = S - s * s_tile
        lane = jax.lax.broadcasted_iota(jnp.int32, x.shape, 1)
        xm = jnp.where(lane < rem, x, 0.0)
        sum_ref[0] += jnp.sum(xm, axis=-1, keepdims=True)


# ---------------------------------------------------------------------------
# Pass 2: pure elementwise channel-wise rescale (lane-dense stores).
# No mask needed: OOB lanes of the ragged last block are dropped on store.
# ---------------------------------------------------------------------------
def _scale_kernel(x_ref, s_ref, o_ref):
    o_ref[0] = x_ref[0] * s_ref[0]


# ---------------------------------------------------------------------------
# Host wrapper.
# ---------------------------------------------------------------------------
def sqex(x, w1, w2, *, s_tile=None, force_two_pass=False):
    """Squeeze-and-excitation over an NCDHW volume.

    x:  (N, C, D, H, W) float32
    w1: (C//r, C) -- PyTorch linear1.weight (out, in), no bias
    w2: (C, C//r) -- PyTorch linear2.weight (out, in), no bias
    """
    N, C, D, H, W = x.shape
    hid = w1.shape[0]
    S = D * H * W
    itemsize = jnp.dtype(x.dtype).itemsize

    target_tile_bytes, vmem_limit = _vmem_budget()
    x2 = x.reshape(N, C, S)

    # --- fused single-pass path for small volumes ---------------------------
    slab_bytes = C * S * itemsize
    use_fused = (not force_two_pass) and (
        4 * slab_bytes + (1 << 16) <= vmem_limit // 2
    )
    if use_fused:
        out = pl.pallas_call(
            functools.partial(_fused_kernel, inv_s=1.0 / S),
            out_shape=jax.ShapeDtypeStruct((N, C, S), x.dtype),
            grid=(N,),
            in_specs=[
                pl.BlockSpec((1, C, S), lambda n: (n, 0, 0)),
                pl.BlockSpec((C, hid), lambda n: (0, 0)),
                pl.BlockSpec((C, hid), lambda n: (0, 0)),
            ],
            out_specs=pl.BlockSpec((1, C, S), lambda n: (n, 0, 0)),
            compiler_params=pltpu.CompilerParams(
                dimension_semantics=("parallel",),
                vmem_limit_bytes=vmem_limit,
            ),
        )(x2, jnp.transpose(w1), w2)
        return out.reshape(N, C, D, H, W)

    # --- two-pass path -------------------------------------------------------
    if s_tile is None:
        s_tile = _pick_s_tile(C, S, itemsize, target_tile_bytes)
    s_tiles = pl.cdiv(S, s_tile)

    # Pass 1: per-(N, C) spatial sum (reduction over the S axis).
    sums = pl.pallas_call(
        functools.partial(_pool_kernel, S=S, s_tile=s_tile),
        out_shape=jax.ShapeDtypeStruct((N, C, 1), jnp.float32),
        grid=(N, s_tiles),
        in_specs=[pl.BlockSpec((1, C, s_tile), lambda n, s: (n, 0, s))],
        out_specs=pl.BlockSpec((1, C, 1), lambda n, s: (n, 0, 0)),
        compiler_params=pltpu.CompilerParams(
            dimension_semantics=("parallel", "arbitrary"),
            vmem_limit_bytes=vmem_limit,
        ),
    )(x2)

    # Tiny excite MLP, batched over N, hoisted out of the hot loop.
    pool = sums[:, :, 0] * (1.0 / S)                       # (N, C) true mean
    h = jnp.maximum(pool @ w1.T, 0.0)                      # (N, hid)
    scale = jax.nn.sigmoid(h @ w2.T).astype(x.dtype)       # (N, C)
    scale = scale.reshape(N, C, 1)

    # Pass 2: HBM-bound elementwise rescale; no padding, no output slice.
    out = pl.pallas_call(
        _scale_kernel,
        out_shape=jax.ShapeDtypeStruct((N, C, S), x.dtype),
        grid=(N, s_tiles),
        in_specs=[
            pl.BlockSpec((1, C, s_tile), lambda n, s: (n, 0, s)),
            pl.BlockSpec((1, C, 1), lambda n, s: (n, 0, 0)),
        ],
        out_specs=pl.BlockSpec((1, C, s_tile), lambda n, s: (n, 0, s)),
        compiler_params=pltpu.CompilerParams(
            dimension_semantics=("parallel", "parallel"),
            vmem_limit_bytes=vmem_limit,
        ),
    )(x2, scale)

    return out.reshape(N, C, D, H, W)


def sqex_ref(x, w1, w2):
    # Pure-JAX reference mirroring the PyTorch forward.
    pool = jnp.mean(x, axis=(2, 3, 4))                     # (N, C)
    h = jnp.maximum(pool @ w1.T, 0.0)                      # (N, C//r)
    s = jax.nn.sigmoid(h @ w2.T)                           # (N, C)
    return x * s[:, :, None, None, None]


if __name__ == "__main__":
    def make_inputs(key, N, C, D, H, W, r):
        hid = C // r
        kx, k1, k2 = jax.random.split(key, 3)
        x = jax.random.normal(kx, (N, C, D, H, W), dtype=jnp.float32)
        # PyTorch nn.Linear weight shape: (out, in)
        w1 = jax.random.normal(k1, (hid, C), dtype=jnp.float32) * 0.3
        w2 = jax.random.normal(k2, (C, hid), dtype=jnp.float32) * 0.3
        return x, w1, w2

    key = jax.random.PRNGKey(0)
    k0, k1 = jax.random.split(key)

    # n_features = 12, reduction = 6 (module default) -> hidden = 2
    x, w1, w2 = make_inputs(k0, 2, 12, 4, 8, 8, 6)
    ref = jax.block_until_ready(sqex_ref(x, w1, w2))

    # 1) Default dispatch (small volume -> fused single-pass kernel).
    out = jax.block_until_ready(sqex(x, w1, w2))
    assert out.shape == x.shape
    assert jnp.allclose(out, ref, atol=1e-5, rtol=1e-5)

    # 2) Forced two-pass path (exact tiling: S == s_tile).
    out2 = jax.block_until_ready(sqex(x, w1, w2, force_two_pass=True))
    assert jnp.allclose(out2, ref, atol=1e-5, rtol=1e-5)

    # 3) Forced two-pass path with a ragged last tile (S = 189, s_tile = 128).
    xr, w1r, w2r = make_inputs(k1, 1, 12, 3, 7, 9, 6)
    refr = jax.block_until_ready(sqex_ref(xr, w1r, w2r))
    outr = jax.block_until_ready(
        sqex(xr, w1r, w2r, force_two_pass=True, s_tile=128)
    )
    assert jnp.allclose(outr, refr, atol=1e-5, rtol=1e-5)

    print("KERNEL_OK")
</pallas_src>

<mosaic_0001>
module attributes {stable_mosaic.version = 11 : i64} {
  func.func @_fused_kernel(%arg0: i32, %arg1: memref<1x12x256xf32, #tpu.memory_space<vmem>>, %arg2: memref<12x2xf32, #tpu.memory_space<vmem>>, %arg3: memref<12x2xf32, #tpu.memory_space<vmem>>, %arg4: memref<1x12x256xf32, #tpu.memory_space<vmem>>) attributes {dimension_semantics = [#tpu.dimension_semantics<parallel>], iteration_bounds = array<i64: 2>, scalar_prefetch = 0 : i64, scratch_operands = 0 : i64, tpu.core_type = #tpu.core_type<tc>, window_params = [{transform_indices = @transform_0, window_bounds = array<i64: 1, 12, 256>}, {pipeline_mode = #tpu.pipeline_mode<synchronous>, transform_indices = @transform_1, window_bounds = array<i64: 12, 2>}, {pipeline_mode = #tpu.pipeline_mode<synchronous>, transform_indices = @transform_2, window_bounds = array<i64: 12, 2>}, {transform_indices = @transform_3, window_bounds = array<i64: 1, 12, 256>}]} {
    %c0 = arith.constant 0 : index
    %c0_0 = arith.constant 0 : index
    %c0_1 = arith.constant 0 : index
    %0 = vector.load %arg1[%c0, %c0_0, %c0_1] : memref<1x12x256xf32, #tpu.memory_space<vmem>>, vector<1x12x256xf32>
    %1 = vector.shape_cast %0 : vector<1x12x256xf32> to vector<12x256xf32>
    %cst = arith.constant dense<0.000000e+00> : vector<12xf32>
    %2 = vector.multi_reduction <add>, %1, %cst [1] : vector<12x256xf32> to vector<12xf32>
    %3 = vector.shape_cast %2 : vector<12xf32> to vector<12x1xf32>
    %cst_2 = arith.constant 3.906250e-03 : f32
    %4 = vector.broadcast %cst_2 : f32 to vector<12x1xf32>
    %5 = arith.mulf %3, %4 : vector<12x1xf32>
    %c0_3 = arith.constant 0 : index
    %c0_4 = arith.constant 0 : index
    %6 = vector.load %arg2[%c0_3, %c0_4] : memref<12x2xf32, #tpu.memory_space<vmem>>, vector<12x2xf32>
    %7 = vector.broadcast %5 : vector<12x1xf32> to vector<12x2xf32>
    %8 = arith.mulf %6, %7 : vector<12x2xf32>
    %cst_5 = arith.constant dense<0.000000e+00> : vector<2xf32>
    %9 = vector.multi_reduction <add>, %8, %cst_5 [0] : vector<12x2xf32> to vector<2xf32>
    %10 = vector.shape_cast %9 : vector<2xf32> to vector<1x2xf32>
    %cst_6 = arith.constant 0.000000e+00 : f32
    %11 = vector.broadcast %cst_6 : f32 to vector<1x2xf32>
    %12 = arith.maximumf %10, %11 : vector<1x2xf32>
    %c0_7 = arith.constant 0 : index
    %c0_8 = arith.constant 0 : index
    %13 = vector.load %arg3[%c0_7, %c0_8] : memref<12x2xf32, #tpu.memory_space<vmem>>, vector<12x2xf32>
    %14 = vector.broadcast %12 : vector<1x2xf32> to vector<12x2xf32>
    %15 = arith.mulf %13, %14 : vector<12x2xf32>
    %cst_9 = arith.constant dense<0.000000e+00> : vector<12xf32>
    %16 = vector.multi_reduction <add>, %15, %cst_9 [1] : vector<12x2xf32> to vector<12xf32>
    %17 = vector.shape_cast %16 : vector<12xf32> to vector<12x1xf32>
    %18 = arith.negf %17 : vector<12x1xf32>
    %19 = math.exp %18 : vector<12x1xf32>
    %cst_10 = arith.constant 1.000000e+00 : f32
    %20 = vector.broadcast %cst_10 : f32 to vector<12x1xf32>
    %21 = arith.addf %20, %19 : vector<12x1xf32>
    %22 = arith.divf %20, %21 : vector<12x1xf32>
    %23 = vector.broadcast %22 : vector<12x1xf32> to vector<12x256xf32>
    %24 = arith.mulf %1, %23 : vector<12x256xf32>
    %c0_11 = arith.constant 0 : index
    %c0_12 = arith.constant 0 : index
    %c0_13 = arith.constant 0 : index
    %25 = vector.load %arg4[%c0_11, %c0_12, %c0_13] : memref<1x12x256xf32, #tpu.memory_space<vmem>>, vector<1x12x256xf32>
    %26 = vector.shape_cast %25 : vector<1x12x256xf32> to vector<12x256xf32>
    %27 = vector.shape_cast %24 : vector<12x256xf32> to vector<1x12x256xf32>
    tpu.vector_store %arg4[%c0_11, %c0_12, %c0_13], %27 {strides = array<i32>} : memref<1x12x256xf32, #tpu.memory_space<vmem>>, vector<1x12x256xf32>,
    return
  }
  func.func @transform_0(%arg0: i32) -> (i32, i32, i32) {
    %c0_i32 = arith.constant 0 : i32
    %c0_i32_0 = arith.constant 0 : i32
    %c0_i32_1 = arith.constant 0 : i32
    return %arg0, %c0_i32, %c0_i32_0 : i32, i32, i32
  }
  func.func @transform_1(%arg0: i32) -> (i32, i32) {
    %c0_i32 = arith.constant 0 : i32
    %c0_i32_0 = arith.constant 0 : i32
    %c0_i32_1 = arith.constant 0 : i32
    return %c0_i32, %c0_i32_0 : i32, i32
  }
  func.func @transform_2(%arg0: i32) -> (i32, i32) {
    %c0_i32 = arith.constant 0 : i32
    %c0_i32_0 = arith.constant 0 : i32
    %c0_i32_1 = arith.constant 0 : i32
    return %c0_i32, %c0_i32_0 : i32, i32
  }
  func.func @transform_3(%arg0: i32) -> (i32, i32, i32) {
    %c0_i32 = arith.constant 0 : i32
    %c0_i32_0 = arith.constant 0 : i32
    %c0_i32_1 = arith.constant 0 : i32
    return %arg0, %c0_i32, %c0_i32_0 : i32, i32, i32
  }
}

</mosaic_0001>

<llo_original>
// kernel: tpu_custom_call.1
$region0: #{tpu_custom_call.1}
  #allocation0 [shape = 'u32[]', space=smem, size = 0x4, offset = 0x4, fixed_abs, tag = 'smem constant byte address 0x4 - core index']
  #allocation1 [shape = 'u32[144,128]{1,0:T(1,128)}', space=vmem, size = 0x12000, scoped, tag = 'internal scratch']
  %s0 = inlined_call_operand.vmem [shape: f32[2,12,256], index: 0, kind: input, shape index: {}]
  %s1 = inlined_call_operand.vmem [shape: f32[12,2], index: 1, kind: input, shape index: {}]
  %s2 = inlined_call_operand.vmem [shape: f32[12,2], index: 2, kind: input, shape index: {}]
  %s3 = inlined_call_operand.vmem [shape: f32[2,12,256], index: 3, kind: output, shape index: {}]
  %s4 = sld [smem:[#allocation0]]
  $region45: #{tpu_custom_call.1} parent=0
    _
  %s6 = ssub.s32 1, %s4
  %s7 = scalar_select 0, %s6, %s4
  loop: start=0, step=1, limit=4
  $region2: #{tpu_custom_call.1} parent=0 // loop_pre_header
    _
  $region3: #{tpu_custom_call.1} parent=0 // loop_header
    %s9 = sphi 0, %s13
    %p10 = scmp.ge.s32.totalorder %s9, 4
    %s19 = sphi 0, %s21
    %s22 = sphi 0, %s19
    %s23 = sphi 0, %s22
    %s39 = sphi 0, %s23
    %s43 = sphi 0, %s43
    %s45 = sphi 0, %s43
    %s46 = sphi 0, %s45
    %s60 = sphi 0, %s46
    %s64 = sphi 0, %s64
    %s66 = sphi 0, %s64
    %s67 = sphi 0, %s66
    %s81 = sphi 0, %s67
    %s87 = sphi 0, %s89
    %s90 = sphi 0, %s87
    %s91 = sphi 0, %s90
    %s107 = sphi 0, %s91
  $region4: #{tpu_custom_call.1} parent=0 // loop_header_branch
    %12 = sbr.rel (%p10) target = $region8
  $region5: #{tpu_custom_call.1} parent=0 // loop_body
    %s14 = ssub.s32 %s9, 1
    %s15 = ssub.s32 %s9, 2
    %s16 = sadd.s32 %s9, 1
    %s17 = ssub.s32 %s9, %s16
    %p18 = scmp.eq.s32.totalorder %s17, 0
    %s20 = sadd.s32 %s19, 1
    %s21 = scalar_select %p18, %s19, %s20
    %p24 = pneg %p18
    %p25 = scmp.eq.s32.totalorder %s9, 1
    %p26 = por %p24, %p25
    %p27 = scmp.ne.s32.totalorder %s19, %s22
    %p28 = scmp.eq.s32.totalorder %s9, 0
    %p29 = por %p27, %p28
    %p30 = scmp.ne.s32.totalorder %s19, %s22
    %p31 = scmp.eq.s32.totalorder %s14, 1
    %p32 = por %p30, %p31
    %p33 = scmp.ne.s32.totalorder %s22, %s23
    %p34 = scmp.eq.s32.totalorder %s14, 0
    %p35 = por %p33, %p34
    %p36 = scmp.ne.s32.totalorder %s22, %s23
    %p37 = scmp.eq.s32.totalorder %s15, 1
    %p38 = por %p36, %p37
    %p40 = scmp.ne.s32.totalorder %s23, %s39
    %p41 = scmp.eq.s32.totalorder %s15, 0
    %p42 = por %p40, %p41
    %s44 = sadd.s32 %s43, 1
    %p47 = scmp.eq.s32.totalorder %s9, 1
    %p48 = scmp.ne.s32.totalorder %s43, %s45
    %p49 = scmp.eq.s32.totalorder %s9, 0
    %p50 = por %p48, %p49
    %p51 = scmp.ne.s32.totalorder %s43, %s45
    %p52 = scmp.eq.s32.totalorder %s14, 1
    %p53 = por %p51, %p52
    %p54 = scmp.ne.s32.totalorder %s45, %s46
    %p55 = scmp.eq.s32.totalorder %s14, 0
    %p56 = por %p54, %p55
    %p57 = scmp.ne.s32.totalorder %s45, %s46
    %p58 = scmp.eq.s32.totalorder %s15, 1
    %p59 = por %p57, %p58
    %p61 = scmp.ne.s32.totalorder %s46, %s60
    %p62 = scmp.eq.s32.totalorder %s15, 0
    %p63 = por %p61, %p62
    %s65 = sadd.s32 %s64, 1
    %p68 = scmp.eq.s32.totalorder %s9, 1
    %p69 = scmp.ne.s32.totalorder %s64, %s66
    %p70 = scmp.eq.s32.totalorder %s9, 0
    %p71 = por %p69, %p70
    %p72 = scmp.ne.s32.totalorder %s64, %s66
    %p73 = scmp.eq.s32.totalorder %s14, 1
    %p74 = por %p72, %p73
    %p75 = scmp.ne.s32.totalorder %s66, %s67
    %p76 = scmp.eq.s32.totalorder %s14, 0
    %p77 = por %p75, %p76
    %p78 = scmp.ne.s32.totalorder %s66, %s67
    %p79 = scmp.eq.s32.totalorder %s15, 1
    %p80 = por %p78, %p79
    %p82 = scmp.ne.s32.totalorder %s67, %s81
    %p83 = scmp.eq.s32.totalorder %s15, 0
    %p84 = por %p82, %p83
    %s85 = ssub.s32 %s9, %s16
    %p86 = scmp.eq.s32.totalorder %s85, 0
    %s88 = sadd.s32 %s87, 1
    %s89 = scalar_select %p86, %s87, %s88
    %p92 = pneg %p86
    %p93 = scmp.eq.s32.totalorder %s9, 1
    %p94 = por %p92, %p93
    %p95 = scmp.ne.s32.totalorder %s87, %s90
    %p96 = scmp.eq.s32.totalorder %s9, 0
    %p97 = por %p95, %p96
    %p98 = scmp.ne.s32.totalorder %s87, %s90
    %p99 = scmp.eq.s32.totalorder %s14, 1
    %p100 = por %p98, %p99
    %p101 = scmp.ne.s32.totalorder %s90, %s91
    %p102 = scmp.eq.s32.totalorder %s14, 0
    %p103 = por %p101, %p102
    %p104 = scmp.ne.s32.totalorder %s90, %s91
    %p105 = scmp.eq.s32.totalorder %s15, 1
    %p106 = por %p104, %p105
    %p108 = scmp.ne.s32.totalorder %s91, %s107
    %p109 = scmp.eq.s32.totalorder %s15, 0
    %p110 = por %p108, %p109
    %p111 = scmp.le.s32.totalorder 1, %s9
    %p112 = scmp.lt.s32.totalorder %s9, 3
    %p113 = pnand %p111, %p112
    %p114 = pneg %p113
    // Predicated region
    $region9: #{tpu_custom_call.1} parent=5 // pred_check
      _
    $region10: #{tpu_custom_call.1} parent=5 // pred_check_branch
      %116 = sbr.rel (%p113) target = $region12
    $region11: #{tpu_custom_call.1} parent=5 // pred_region
      %s117 = ssub.s32 %s9, 1
      // Predicated region
      $region13: #{tpu_custom_call.1} parent=11 // pred_check
        %p118 = pneg %p56
      $region14: #{tpu_custom_call.1} parent=11 // pred_check_branch
        %120 = sbr.rel (%p118) target = $region16
      $region15: #{tpu_custom_call.1} parent=11 // pred_region
        _
      $region16: #{tpu_custom_call.1} parent=11 // pred_fallthru
        _
      // Predicated region
      $region17: #{tpu_custom_call.1} parent=11 // pred_check
        %p121 = pneg %p77
      $region18: #{tpu_custom_call.1} parent=11 // pred_check_branch
        %123 = sbr.rel (%p121) target = $region20
      $region19: #{tpu_custom_call.1} parent=11 // pred_region
        _
      $region20: #{tpu_custom_call.1} parent=11 // pred_fallthru
        _
    $region12: #{tpu_custom_call.1} parent=5 // pred_fallthru
      _
    %p124 = scmp.lt.s32.totalorder %s9, 2
    // Predicated region
    $region21: #{tpu_custom_call.1} parent=5 // pred_check
      %p125 = pneg %p124
    $region22: #{tpu_custom_call.1} parent=5 // pred_check_branch
      %127 = sbr.rel (%p125) target = $region24
    $region23: #{tpu_custom_call.1} parent=5 // pred_region
      // Predicated region
      $region25: #{tpu_custom_call.1} parent=23 // pred_check
        %p128 = pneg %p29
      $region26: #{tpu_custom_call.1} parent=23 // pred_check_branch
        %130 = sbr.rel (%p128) target = $region28
      $region27: #{tpu_custom_call.1} parent=23 // pred_region
        %p131 = scmp.lt.s32.totalorder %s9, 1
        %s132 = scalar_select %p131, %s9, 1
        %s133 = smul.addr %s132, 4
        %s134 = smul.addr %s133, 8
        %s135 = scalar_lea.vmem %s0, %s134
      $region28: #{tpu_custom_call.1} parent=23 // pred_fallthru
        _
    $region24: #{tpu_custom_call.1} parent=5 // pred_fallthru
      _
    %p136 = scmp.le.s32.totalorder 1, %s9
    %p137 = scmp.lt.s32.totalorder %s9, 3
    %p138 = pnand %p136, %p137
    %p139 = pneg %p138
    // Predicated region
    $region29: #{tpu_custom_call.1} parent=5 // pred_check
      _
    $region30: #{tpu_custom_call.1} parent=5 // pred_check_branch
      %141 = sbr.rel (%p138) target = $region32
    $region31: #{tpu_custom_call.1} parent=5 // pred_region
      %s142 = ssub.s32 %s9, 1
      %p143 = scmp.lt.s32.totalorder %s14, 1
      %s144 = scalar_select %p143, %s14, 1
      %s145 = smul.addr %s144, 4
      %s146 = smul.addr %s145, 8
      %s147 = scalar_lea.vmem %s0, %s146
      %p148 = pneg %p35
      %p149 = pneg %p32
      %p150 = pneg %p56
      %p151 = pneg %p53
      %p152 = pneg %p77
      %p153 = pneg %p74
      %p154 = pneg %p103
      %p155 = pneg %p100
      %p156 = scmp.lt.s32.totalorder %s14, 1
      %s157 = scalar_select %p156, %s14, 1
      %s158 = smul.addr %s157, 4
      %s159 = smul.addr %s158, 8
      %s160 = scalar_lea.vmem %s3, %s159
      %p161 = scmp.lt.s32.totalorder %s14, 1
      %s162 = scalar_select %p161, %s14, 1
      %s163 = smul.addr %s162, 4
      %s164 = smul.addr %s163, 8
      %s165 = scalar_lea.vmem %s0, %s164
      %p166 = scmp.lt.s32.totalorder %s14, 1
      %s167 = scalar_select %p166, %s14, 1
      %s168 = smul.addr %s167, 4
      %s169 = smul.addr %s168, 8
      %s170 = scalar_lea.vmem %s3, %s169
      %v171 = vld [vmem:[%s165] sm:$0xff]
      %v172 = vld [vmem:[%s165 + $0x8] sm:$0xff]
      %v173 = vld [vmem:[%s165 + $0x10] sm:$0xf]
      %v174 = vld [vmem:[%s165 + $0x18] sm:$0xf]
      %v175 = vadd.f32 %v171, %v172
      %176 = vadd.xlane.f32.xlu0 %v175
      %v177 = vpop.xlane.xlu0 %176
      %vm178 = vcmask 1043456
      %v179 = vsel %vm178, %v173, 0.0
      %v180 = vsel %vm178, %v174, 0.0
      %v181 = vadd.f32 %v179, %v180
      %182 = vadd.xlane.f32.xlu0 %v181
      %v183 = vpop.xlane.xlu0 %182
      %v184 = vmul.f32 %v177, 0.00390625
      %v185 = vmul.f32 %v183, 0.00390625
      %v186 = vld [vmem:[%s1] sm:$0xff]
      %v187 = vld [vmem:[%s1 + $0x8] sm:$0xf]
      %v188 = vmul.f32 %v186, %v184
      %v189 = vmul.f32 %v187, %v185
      %vm190 = vcmask 15360
      %v191 = vsel %vm190, %v188, 0.0
      %vm192 = vcmask 11264
      %v193 = vsel %vm192, %v189, 0.0
      %v194 = vadd.f32 %v191, %v193
      %v195 = vrot.slane %v194, 4
      %v196 = vadd.f32 %v194, %v195
      %v197 = vrot.slane %v196, 2
      %v198 = vadd.f32 %v196, %v197
      %v199 = vrot.slane %v198, 1
      %v200 = vadd.f32 %v198, %v199
      %v201 = vmax.f32 %v200, 0.0
      %v202 = vld [vmem:[%s2] sm:$0xff]
      %v203 = vld [vmem:[%s2 + $0x8] sm:$0xf]
      %v204 = vmul.f32 %v202, %v201
      %v205 = vmul.f32 %v203, %v201
      %v206 = vsel %vm190, %v204, 0.0
      %207 = vadd.xlane.f32.xlu0 %v206
      %v208 = vpop.xlane.xlu0 %207
      %v209 = vsel %vm192, %v205, 0.0
      %210 = vadd.xlane.f32.xlu0 %v209
      %v211 = vpop.xlane.xlu0 %210
      %v212 = vxor.u32 %v208, 2147483648
      %v213 = vxor.u32 %v211, 2147483648
      %v214 = vmul.f32 %v212, 1.442695
      %v215 = vpow.pop %v214
      %v216 = vmul.f32 %v213, 1.442695
      %v217 = vpow.pop %v216
      %v218 = vadd.f32 %v215, 1.0
      %v219 = vadd.f32 %v217, 1.0
      %v220 = vrcp.pop %v218
      %v221 = vmul.f32 1.0, %v220
      %v222 = vrcp.pop %v219
      %v223 = vmul.f32 1.0, %v222
      %v224 = vmul.f32 %v171, %v221
      %v225 = vmul.f32 %v172, %v221
      %v226 = vmul.f32 %v173, %v223
      %v227 = vmul.f32 %v174, %v223
      %228 = vst [vmem:[%s170] sm:$0xff] %v224
      %229 = vst [vmem:[%s170 + $0x8] sm:$0xff] %v225
      %230 = vst [vmem:[%s170 + $0x10] sm:$0xf] %v226
      %231 = vst [vmem:[%s170 + $0x18] sm:$0xf] %v227
      %p232 = scmp.lt.s32.totalorder %s14, 1
      %s233 = scalar_select %p232, %s14, 1
      %s234 = smul.addr %s233, 4
      %s235 = smul.addr %s234, 8
      %s236 = scalar_lea.vmem %s3, %s235
      // Predicated region
      $region33: #{tpu_custom_call.1} parent=31 // pred_check
        %p237 = pneg %p100
      $region34: #{tpu_custom_call.1} parent=31 // pred_check_branch
        %239 = sbr.rel (%p237) target = $region36
      $region35: #{tpu_custom_call.1} parent=31 // pred_region
        _
      $region36: #{tpu_custom_call.1} parent=31 // pred_fallthru
        _
    $region32: #{tpu_custom_call.1} parent=5 // pred_fallthru
      _
    %p240 = scmp.le.s32.totalorder 2, %s9
    // Predicated region
    $region37: #{tpu_custom_call.1} parent=5 // pred_check
      %p241 = pneg %p240
    $region38: #{tpu_custom_call.1} parent=5 // pred_check_branch
      %243 = sbr.rel (%p241) target = $region40
    $region39: #{tpu_custom_call.1} parent=5 // pred_region
      %s244 = ssub.s32 %s9, 2
      // Predicated region
      $region41: #{tpu_custom_call.1} parent=39 // pred_check
        %p245 = pneg %p106
      $region42: #{tpu_custom_call.1} parent=39 // pred_check_branch
        %247 = sbr.rel (%p245) target = $region44
      $region43: #{tpu_custom_call.1} parent=39 // pred_region
        %p248 = scmp.lt.s32.totalorder %s15, 1
        %s249 = scalar_select %p248, %s15, 1
        %s250 = smul.addr %s249, 4
        %s251 = smul.addr %s250, 8
        %s252 = scalar_lea.vmem %s3, %s251
      $region44: #{tpu_custom_call.1} parent=39 // pred_fallthru
        _
    $region40: #{tpu_custom_call.1} parent=5 // pred_fallthru
      _
  $region6: #{tpu_custom_call.1} parent=0 // loop_footer
    %s13 = sadd.s32 1, %s9
  $region7: #{tpu_custom_call.1} parent=0 // loop_footer_branch
    %8 = sbr.rel target = $region3
  $region8: #{tpu_custom_call.1} parent=0 // loop_exit
    _

</llo_original>
